<compile_context>
chip_gen: v5e
topology: v5e:2x2
jax: 0.10.0
libtpu: 0.0.40
codegen_flags: <defaults>
</compile_context>

<pallas_src>
import jax
import jax.numpy as jnp
import numpy as np
from jax import lax
from jax.experimental import pallas as pl
from jax.experimental.pallas import tpu as pltpu


# ----------------------------------------------------------------------------
# Pallas kernel 1: fused Linear + ReLU   (y = relu(x @ W^T + b)), row-tiled.
# ----------------------------------------------------------------------------
def fc_relu_kernel(x_ref, w_ref, b_ref, o_ref):
    # x_ref: (rb, Din), w_ref: (Din, H)  (pre-transposed), b_ref: (1, H)
    y = jnp.dot(x_ref[...], w_ref[...], preferred_element_type=jnp.float32)
    y = y + b_ref[...]
    o_ref[...] = jnp.maximum(y, 0.0).astype(o_ref.dtype)


def _pick_row_block(n, candidates=(256, 128, 64, 32, 16, 8)):
    for c in candidates:
        if n % c == 0:
            return c
    return n  # fallback: single full block (still legal: equals full dim)


def fc_relu(x, w_t, b):
    N, Din = x.shape
    H = w_t.shape[1]
    rb = _pick_row_block(N)
    grid = (N // rb,)

    # Explicit scoped-VMEM limit sized from the blocks (x2 for double-buffering),
    # never below the 32 MiB default, never above v7x's 64 MiB physical VMEM.
    blk_bytes = 4 * (rb * Din + Din * H + H + rb * H)
    vmem_limit = int(min(max(2 * blk_bytes + (1 << 20), 32 << 20), 64 << 20))

    return pl.pallas_call(
        fc_relu_kernel,
        out_shape=jax.ShapeDtypeStruct((N, H), jnp.float32),
        grid_spec=pltpu.PrefetchScalarGridSpec(
            num_scalar_prefetch=0,
            grid=grid,
            in_specs=[
                pl.BlockSpec((rb, Din), lambda i: (i, 0)),
                pl.BlockSpec((Din, H), lambda i: (0, 0)),   # weight stays resident
                pl.BlockSpec((1, H), lambda i: (0, 0)),
            ],
            out_specs=pl.BlockSpec((rb, H), lambda i: (i, 0)),
        ),
        compiler_params=pltpu.CompilerParams(
            dimension_semantics=("parallel",),
            vmem_limit_bytes=vmem_limit,
        ),
    )(x, w_t, b)


# ----------------------------------------------------------------------------
# Pallas kernel 2: fused bidirectional LSTM recurrence (time-major, fwd+bwd in
# one loop, no data reversals).  One grid step == one sequence (context/response).
#   x_ref    : (T, B, D)     input activations for this sequence
#   wih_ref  : (D, 8H)       [wih_fwd || wih_bwd]  (pre-transposed, gates i,f,g,o)
#   whh_f/b  : (H, 4H)       recurrent weights per direction (pre-transposed)
#   b_ref    : (1, 8H)       [b_fwd || b_bwd]      (each = b_ih + b_hh)
#   out_f/b  : (T, B, H)     per-direction hidden states in natural time order
#   xp_f/b   : (T, B, 4H)    VMEM scratch, precomputed input projections
# ----------------------------------------------------------------------------
def bilstm_kernel(x_ref, wih_ref, whh_f_ref, whh_b_ref, b_ref,
                  out_f_ref, out_b_ref, xp_f_ref, xp_b_ref):
    T, B, D = x_ref.shape
    H = whh_f_ref.shape[0]

    # One MXU matmul covers both directions' input projections for all timesteps.
    x2 = x_ref[...].reshape(T * B, D)
    xp = jnp.dot(x2, wih_ref[...], preferred_element_type=jnp.float32) + b_ref[...]
    xp = xp.reshape(T, B, 8 * H)
    xp_f_ref[...] = xp[:, :, : 4 * H]
    xp_b_ref[...] = xp[:, :, 4 * H:]

    def gates(g, c):
        gi = jax.nn.sigmoid(g[:, 0 * H:1 * H])
        gf = jax.nn.sigmoid(g[:, 1 * H:2 * H])
        gg = jnp.tanh(g[:, 2 * H:3 * H])
        go = jax.nn.sigmoid(g[:, 3 * H:4 * H])
        c_new = gf * c + gi * gg
        h_new = go * jnp.tanh(c_new)
        return h_new, c_new

    def step(s, carry):
        h_f, c_f, h_b, c_b = carry
        sb = T - 1 - s  # backward direction walks time in reverse in-place

        g_f = xp_f_ref[pl.ds(s, 1)].reshape(B, 4 * H) + jnp.dot(
            h_f, whh_f_ref[...], preferred_element_type=jnp.float32)
        g_b = xp_b_ref[pl.ds(sb, 1)].reshape(B, 4 * H) + jnp.dot(
            h_b, whh_b_ref[...], preferred_element_type=jnp.float32)

        h_f, c_f = gates(g_f, c_f)
        h_b, c_b = gates(g_b, c_b)

        out_f_ref[pl.ds(s, 1)] = h_f[None].astype(out_f_ref.dtype)
        out_b_ref[pl.ds(sb, 1)] = h_b[None].astype(out_b_ref.dtype)
        return (h_f, c_f, h_b, c_b)

    z = jnp.zeros((B, H), jnp.float32)
    lax.fori_loop(0, T, step, (z, z, z, z))


def bilstm_pair(x, p):
    """x: (2, T, B, D) time-major inputs for (context, response).
    Returns (out_f, out_b), each (2, T, B, H), both in natural time order."""
    S, T, B, D = x.shape
    H = p["whh_f"].shape[-1] // 4

    blk_bytes = 4 * (T * B * D + D * 8 * H + 2 * H * 4 * H + 8 * H
                     + 2 * T * B * H + 2 * T * B * 4 * H)
    vmem_limit = int(min(max(2 * blk_bytes + (1 << 20), 32 << 20), 64 << 20))

    return pl.pallas_call(
        bilstm_kernel,
        out_shape=(jax.ShapeDtypeStruct((S, T, B, H), jnp.float32),
                   jax.ShapeDtypeStruct((S, T, B, H), jnp.float32)),
        grid_spec=pltpu.PrefetchScalarGridSpec(
            num_scalar_prefetch=0,
            grid=(S,),
            in_specs=[
                pl.BlockSpec((None, T, B, D), lambda s: (s, 0, 0, 0)),
                pl.BlockSpec((None, D, 8 * H), lambda s: (s, 0, 0)),
                pl.BlockSpec((None, H, 4 * H), lambda s: (s, 0, 0)),
                pl.BlockSpec((None, H, 4 * H), lambda s: (s, 0, 0)),
                pl.BlockSpec((None, 1, 8 * H), lambda s: (s, 0, 0)),
            ],
            out_specs=[pl.BlockSpec((None, T, B, H), lambda s: (s, 0, 0, 0)),
                       pl.BlockSpec((None, T, B, H), lambda s: (s, 0, 0, 0))],
            scratch_shapes=[pltpu.VMEM((T, B, 4 * H), jnp.float32),
                            pltpu.VMEM((T, B, 4 * H), jnp.float32)],
        ),
        compiler_params=pltpu.CompilerParams(
            dimension_semantics=("parallel",),   # context / response on separate TCs (v7x)
            vmem_limit_bytes=vmem_limit,
        ),
    )(x, p["wih"], p["whh_f"], p["whh_b"], p["b"])


# ----------------------------------------------------------------------------
# Full forward pass (embedding gathers + concat are plain-JAX glue)
# ----------------------------------------------------------------------------
def context_response_encoding(params, context_seq, response_seq):
    B, T = context_seq.shape
    H = params["fc_w_t"].shape[1]

    # Transpose only the tiny int32 id matrices -> time-major, and stack the two
    # sequences so the whole batch goes through ONE fc call and ONE biLSTM call.
    ids = jnp.stack([context_seq.T, response_seq.T], axis=0)          # (2, T, B)

    e = jnp.concatenate(
        [params["emb1"][ids], params["emb2"][ids], params["emb3"][ids],
         params["emb4"][ids], params["emb5"][ids]],
        axis=-1,
    )                                                                  # (2, T, B, Din)
    Din = e.shape[-1]
    y = fc_relu(e.reshape(2 * T * B, Din), params["fc_w_t"], params["fc_b"])
    x = y.reshape(2, T, B, H)                                          # time-major LSTM inputs

    out_f, out_b = bilstm_pair(x, params["lstm"])                      # each (2, T, B, H)
    out = jnp.concatenate([out_f, out_b], axis=-1)                     # (2, T, B, 2H)
    out = jnp.transpose(out, (0, 2, 1, 3))                             # (2, B, T, 2H)
    return out[0], out[1]


# ----------------------------------------------------------------------------
# Pure-JAX reference (for correctness check only)
# ----------------------------------------------------------------------------
def _lstm_dir_ref(x, wih_t, whh_t, b):
    B, T, _ = x.shape
    H = whh_t.shape[0]
    h = jnp.zeros((B, H), jnp.float32)
    c = jnp.zeros((B, H), jnp.float32)
    outs = []
    for t in range(T):
        g = x[:, t] @ wih_t + b + h @ whh_t
        gi = jax.nn.sigmoid(g[:, :H])
        gf = jax.nn.sigmoid(g[:, H:2 * H])
        gg = jnp.tanh(g[:, 2 * H:3 * H])
        go = jax.nn.sigmoid(g[:, 3 * H:])
        c = gf * c + gi * gg
        h = go * jnp.tanh(c)
        outs.append(h)
    return jnp.stack(outs, axis=1)


def _reference(params, context_seq, response_seq):
    H = params["fc_w_t"].shape[1]

    def encode(seq):
        e = jnp.concatenate(
            [params["emb1"][seq], params["emb2"][seq], params["emb3"][seq],
             params["emb4"][seq], params["emb5"][seq]],
            axis=-1,
        )
        return jnp.maximum(e @ params["fc_w_t"] + params["fc_b"], 0.0)

    def bi(x, idx):
        p = params["lstm"]
        wih, b = p["wih"][idx], p["b"][idx]
        fwd = _lstm_dir_ref(x, wih[:, :4 * H], p["whh_f"][idx], b[:, :4 * H])
        bwd = _lstm_dir_ref(x[:, ::-1], wih[:, 4 * H:], p["whh_b"][idx], b[:, 4 * H:])[:, ::-1]
        return jnp.concatenate([fwd, bwd], axis=-1)

    c = encode(context_seq)
    r = encode(response_seq)
    return bi(c, 0), bi(r, 1)


# ----------------------------------------------------------------------------
# Deterministic parameter construction (scaled-down module sizes)
# ----------------------------------------------------------------------------
def make_params(key, vocab, E, E3, H):
    ks = jax.random.split(key, 9)
    din = 4 * E + E3

    def lstm_dir(k, d_in):
        k0, k1, k2 = jax.random.split(k, 3)
        return (0.1 * jax.random.normal(k0, (d_in, 4 * H), jnp.float32),
                0.1 * jax.random.normal(k1, (H, 4 * H), jnp.float32),
                0.1 * jax.random.normal(k2, (1, 4 * H), jnp.float32))

    def lstm_pair(k, d_in):
        kf, kb = jax.random.split(k, 2)
        wih_f, whh_f, b_f = lstm_dir(kf, d_in)
        wih_b, whh_b, b_b = lstm_dir(kb, d_in)
        # Pre-concatenate the per-direction input weights/biases OFFLINE so the fused
        # kernel does a single (T*B, D) x (D, 8H) input projection per sequence.
        return {"wih": jnp.concatenate([wih_f, wih_b], axis=1),   # (D, 8H)
                "b": jnp.concatenate([b_f, b_b], axis=1),         # (1, 8H)
                "whh_f": whh_f, "whh_b": whh_b}

    l1 = lstm_pair(ks[7], H)   # biLSTM1 (context)
    l2 = lstm_pair(ks[8], H)   # biLSTM2 (response)
    lstm = {k: jnp.stack([l1[k], l2[k]], axis=0) for k in l1}     # stacked for grid=(2,)

    return {
        "emb1": 0.1 * jax.random.normal(ks[0], (vocab, E), jnp.float32),
        "emb2": 0.1 * jax.random.normal(ks[1], (vocab, E), jnp.float32),
        "emb3": 0.1 * jax.random.normal(ks[2], (vocab, E3), jnp.float32),
        "emb4": 0.1 * jax.random.normal(ks[3], (vocab, E), jnp.float32),
        "emb5": 0.1 * jax.random.normal(ks[4], (vocab, E), jnp.float32),
        "fc_w_t": 0.1 * jax.random.normal(ks[5], (din, H), jnp.float32),
        "fc_b": 0.1 * jax.random.normal(ks[6], (1, H), jnp.float32),
        "lstm": lstm,
    }


if __name__ == "__main__":
    # Small, module-consistent sizes:
    #   output_embedding_size E=32 (stand-in for 300), embedding3 dim E3=16 (for 200),
    #   hidden_size H=32, vocab=100, batch B=2, seq T=8.
    B, T, E, E3, H, VOCAB = 2, 8, 32, 16, 32, 100

    key = jax.random.PRNGKey(0)
    k_par, k_ctx, k_rsp = jax.random.split(key, 3)
    params = make_params(k_par, VOCAB, E, E3, H)

    context_sequence = jax.random.randint(k_ctx, (B, T), 0, VOCAB, dtype=jnp.int32)
    response_sequence = jax.random.randint(k_rsp, (B, T), 0, VOCAB, dtype=jnp.int32)

    ctx_out, rsp_out = jax.jit(context_response_encoding)(
        params, context_sequence, response_sequence
    )
    jax.block_until_ready((ctx_out, rsp_out))

    ctx_ref, rsp_ref = _reference(params, context_sequence, response_sequence)
    assert ctx_out.shape == (B, T, 2 * H) and rsp_out.shape == (B, T, 2 * H)
    np.testing.assert_allclose(np.asarray(ctx_out), np.asarray(ctx_ref), rtol=1e-4, atol=1e-4)
    np.testing.assert_allclose(np.asarray(rsp_out), np.asarray(rsp_ref), rtol=1e-4, atol=1e-4)

    print("KERNEL_OK")
</pallas_src>

<mosaic_0001>
module attributes {stable_mosaic.version = 11 : i64} {
  func.func @fc_relu_kernel(%arg0: i32, %arg1: memref<32x144xf32, #tpu.memory_space<vmem>>, %arg2: memref<144x32xf32, #tpu.memory_space<vmem>>, %arg3: memref<1x32xf32, #tpu.memory_space<vmem>>, %arg4: memref<32x32xf32, #tpu.memory_space<vmem>>) attributes {dimension_semantics = [#tpu.dimension_semantics<parallel>], iteration_bounds = array<i64: 1>, scalar_prefetch = 0 : i64, scratch_operands = 0 : i64, tpu.core_type = #tpu.core_type<tc>, window_params = [{transform_indices = @transform_0, window_bounds = array<i64: 32, 144>}, {pipeline_mode = #tpu.pipeline_mode<synchronous>, transform_indices = @transform_1, window_bounds = array<i64: 144, 32>}, {pipeline_mode = #tpu.pipeline_mode<synchronous>, transform_indices = @transform_2, window_bounds = array<i64: 1, 32>}, {transform_indices = @transform_3, window_bounds = array<i64: 32, 32>}]} {
    %c0 = arith.constant 0 : index
    %c0_0 = arith.constant 0 : index
    %0 = vector.load %arg1[%c0, %c0_0] : memref<32x144xf32, #tpu.memory_space<vmem>>, vector<32x144xf32>
    %c0_1 = arith.constant 0 : index
    %c0_2 = arith.constant 0 : index
    %1 = vector.load %arg2[%c0_1, %c0_2] : memref<144x32xf32, #tpu.memory_space<vmem>>, vector<144x32xf32>
    %cst = arith.constant dense<0.000000e+00> : vector<32x32xf32>
    %2 = tpu.matmul %0, %1, %cst {dimension_numbers = #tpu.dot_dimension_numbers<[1], [0], [0], [1], [0, 0, 1, 1], [], []>} : vector<32x144xf32>, vector<144x32xf32>, vector<32x32xf32> -> vector<32x32xf32>
    %c0_3 = arith.constant 0 : index
    %c0_4 = arith.constant 0 : index
    %3 = vector.load %arg3[%c0_3, %c0_4] : memref<1x32xf32, #tpu.memory_space<vmem>>, vector<1x32xf32>
    %4 = vector.broadcast %3 : vector<1x32xf32> to vector<32x32xf32>
    %5 = arith.addf %2, %4 : vector<32x32xf32>
    %cst_5 = arith.constant 0.000000e+00 : f32
    %6 = vector.broadcast %cst_5 : f32 to vector<32x32xf32>
    %7 = arith.maximumf %5, %6 : vector<32x32xf32>
    %c0_6 = arith.constant 0 : index
    %c0_7 = arith.constant 0 : index
    %8 = vector.load %arg4[%c0_6, %c0_7] : memref<32x32xf32, #tpu.memory_space<vmem>>, vector<32x32xf32>
    tpu.vector_store %arg4[%c0_6, %c0_7], %7 {strides = array<i32>} : memref<32x32xf32, #tpu.memory_space<vmem>>, vector<32x32xf32>,
    return
  }
  func.func @transform_0(%arg0: i32) -> (i32, i32) {
    %c0_i32 = arith.constant 0 : i32
    %c0_i32_0 = arith.constant 0 : i32
    return %arg0, %c0_i32 : i32, i32
  }
  func.func @transform_1(%arg0: i32) -> (i32, i32) {
    %c0_i32 = arith.constant 0 : i32
    %c0_i32_0 = arith.constant 0 : i32
    %c0_i32_1 = arith.constant 0 : i32
    return %c0_i32, %c0_i32_0 : i32, i32
  }
  func.func @transform_2(%arg0: i32) -> (i32, i32) {
    %c0_i32 = arith.constant 0 : i32
    %c0_i32_0 = arith.constant 0 : i32
    %c0_i32_1 = arith.constant 0 : i32
    return %c0_i32, %c0_i32_0 : i32, i32
  }
  func.func @transform_3(%arg0: i32) -> (i32, i32) {
    %c0_i32 = arith.constant 0 : i32
    %c0_i32_0 = arith.constant 0 : i32
    return %arg0, %c0_i32 : i32, i32
  }
}

module attributes {stable_mosaic.version = 11 : i64} {
  func.func @bilstm_kernel(%arg0: i32, %arg1: memref<1x8x2x32xf32, #tpu.memory_space<vmem>>, %arg2: memref<1x32x256xf32, #tpu.memory_space<vmem>>, %arg3: memref<1x32x128xf32, #tpu.memory_space<vmem>>, %arg4: memref<1x32x128xf32, #tpu.memory_space<vmem>>, %arg5: memref<1x1x256xf32, #tpu.memory_space<vmem>>, %arg6: memref<1x8x2x32xf32, #tpu.memory_space<vmem>>, %arg7: memref<1x8x2x32xf32, #tpu.memory_space<vmem>>, %arg8: memref<8x2x128xf32, #tpu.memory_space<vmem>>, %arg9: memref<8x2x128xf32, #tpu.memory_space<vmem>>) attributes {dimension_semantics = [#tpu.dimension_semantics<parallel>], iteration_bounds = array<i64: 2>, scalar_prefetch = 0 : i64, scratch_operands = 2 : i64, tpu.core_type = #tpu.core_type<tc>, window_params = [{transform_indices = @transform_0, window_bounds = array<i64: 1, 8, 2, 32>}, {transform_indices = @transform_1, window_bounds = array<i64: 1, 32, 256>}, {transform_indices = @transform_2, window_bounds = array<i64: 1, 32, 128>}, {transform_indices = @transform_3, window_bounds = array<i64: 1, 32, 128>}, {transform_indices = @transform_4, window_bounds = array<i64: 1, 1, 256>}, {transform_indices = @transform_5, window_bounds = array<i64: 1, 8, 2, 32>}, {transform_indices = @transform_6, window_bounds = array<i64: 1, 8, 2, 32>}]} {
    %c0 = arith.constant 0 : index
    %c0_0 = arith.constant 0 : index
    %c0_1 = arith.constant 0 : index
    %c0_2 = arith.constant 0 : index
    %0 = vector.load %arg1[%c0, %c0_0, %c0_1, %c0_2] : memref<1x8x2x32xf32, #tpu.memory_space<vmem>>, vector<1x8x2x32xf32>
    %1 = vector.shape_cast %0 : vector<1x8x2x32xf32> to vector<8x2x32xf32>
    %2 = vector.shape_cast %1 : vector<8x2x32xf32> to vector<16x32xf32>
    %c0_3 = arith.constant 0 : index
    %c0_4 = arith.constant 0 : index
    %c0_5 = arith.constant 0 : index
    %3 = vector.load %arg2[%c0_3, %c0_4, %c0_5] : memref<1x32x256xf32, #tpu.memory_space<vmem>>, vector<1x32x256xf32>
    %4 = vector.shape_cast %3 : vector<1x32x256xf32> to vector<32x256xf32>
    %cst = arith.constant dense<0.000000e+00> : vector<16x256xf32>
    %5 = tpu.matmul %2, %4, %cst {dimension_numbers = #tpu.dot_dimension_numbers<[1], [0], [0], [1], [0, 0, 1, 1], [], []>} : vector<16x32xf32>, vector<32x256xf32>, vector<16x256xf32> -> vector<16x256xf32>
    %c0_6 = arith.constant 0 : index
    %c0_7 = arith.constant 0 : index
    %c0_8 = arith.constant 0 : index
    %6 = vector.load %arg5[%c0_6, %c0_7, %c0_8] : memref<1x1x256xf32, #tpu.memory_space<vmem>>, vector<1x1x256xf32>
    %7 = vector.shape_cast %6 : vector<1x1x256xf32> to vector<1x256xf32>
    %8 = vector.broadcast %7 : vector<1x256xf32> to vector<16x256xf32>
    %9 = arith.addf %5, %8 : vector<16x256xf32>
    %10 = vector.shape_cast %9 : vector<16x256xf32> to vector<8x2x256xf32>
    %11 = vector.extract_strided_slice %10 {offsets = [0, 0, 0], sizes = [8, 2, 128], strides = [1, 1, 1]} : vector<8x2x256xf32> to vector<8x2x128xf32>
    %c0_9 = arith.constant 0 : index
    %c0_10 = arith.constant 0 : index
    %c0_11 = arith.constant 0 : index
    %12 = vector.load %arg8[%c0_9, %c0_10, %c0_11] : memref<8x2x128xf32, #tpu.memory_space<vmem>>, vector<8x2x128xf32>
    tpu.vector_store %arg8[%c0_9, %c0_10, %c0_11], %11 {strides = array<i32>} : memref<8x2x128xf32, #tpu.memory_space<vmem>>, vector<8x2x128xf32>,
    %13 = vector.extract_strided_slice %10 {offsets = [0, 0, 128], sizes = [8, 2, 128], strides = [1, 1, 1]} : vector<8x2x256xf32> to vector<8x2x128xf32>
    %c0_12 = arith.constant 0 : index
    %c0_13 = arith.constant 0 : index
    %c0_14 = arith.constant 0 : index
    %14 = vector.load %arg9[%c0_12, %c0_13, %c0_14] : memref<8x2x128xf32, #tpu.memory_space<vmem>>, vector<8x2x128xf32>
    tpu.vector_store %arg9[%c0_12, %c0_13, %c0_14], %13 {strides = array<i32>} : memref<8x2x128xf32, #tpu.memory_space<vmem>>, vector<8x2x128xf32>,
    %cst_15 = arith.constant 0.000000e+00 : f32
    %15 = vector.broadcast %cst_15 : f32 to vector<2x32xf32>
    %c0_i32 = arith.constant 0 : i32
    %c8_i32 = arith.constant 8 : i32
    %16 = arith.addi %c0_i32, %c8_i32 : i32
    %c1_i32 = arith.constant 1 : i32
    %17:4 = scf.for %arg10 = %c0_i32 to %16 step %c1_i32 iter_args(%arg11 = %15, %arg12 = %15, %arg13 = %15, %arg14 = %15) -> (vector<2x32xf32>, vector<2x32xf32>, vector<2x32xf32>, vector<2x32xf32>)  : i32 {
      %c7_i32 = arith.constant 7 : i32
      %18 = arith.subi %c7_i32, %arg10 : i32
      %19 = arith.index_cast %arg10 : i32 to index
      %c0_17 = arith.constant 0 : index
      %c0_18 = arith.constant 0 : index
      %20 = vector.load %arg8[%19, %c0_17, %c0_18] : memref<8x2x128xf32, #tpu.memory_space<vmem>>, vector<1x2x128xf32>
      %21 = vector.shape_cast %20 : vector<1x2x128xf32> to vector<2x128xf32>
      %c0_19 = arith.constant 0 : index
      %c0_20 = arith.constant 0 : index
      %c0_21 = arith.constant 0 : index
      %22 = vector.load %arg3[%c0_19, %c0_20, %c0_21] : memref<1x32x128xf32, #tpu.memory_space<vmem>>, vector<1x32x128xf32>
      %23 = vector.shape_cast %22 : vector<1x32x128xf32> to vector<32x128xf32>
      %cst_22 = arith.constant dense<0.000000e+00> : vector<2x128xf32>
      %24 = tpu.matmul %arg11, %23, %cst_22 {dimension_numbers = #tpu.dot_dimension_numbers<[1], [0], [0], [1], [0, 0, 1, 1], [], []>} : vector<2x32xf32>, vector<32x128xf32>, vector<2x128xf32> -> vector<2x128xf32>
      %25 = arith.addf %21, %24 : vector<2x128xf32>
      %26 = arith.index_cast %18 : i32 to index
      %c0_23 = arith.constant 0 : index
      %c0_24 = arith.constant 0 : index
      %27 = vector.load %arg9[%26, %c0_23, %c0_24] : memref<8x2x128xf32, #tpu.memory_space<vmem>>, vector<1x2x128xf32>
      %28 = vector.shape_cast %27 : vector<1x2x128xf32> to vector<2x128xf32>
      %c0_25 = arith.constant 0 : index
      %c0_26 = arith.constant 0 : index
      %c0_27 = arith.constant 0 : index
      %29 = vector.load %arg4[%c0_25, %c0_26, %c0_27] : memref<1x32x128xf32, #tpu.memory_space<vmem>>, vector<1x32x128xf32>
      %30 = vector.shape_cast %29 : vector<1x32x128xf32> to vector<32x128xf32>
      %cst_28 = arith.constant dense<0.000000e+00> : vector<2x128xf32>
      %31 = tpu.matmul %arg13, %30, %cst_28 {dimension_numbers = #tpu.dot_dimension_numbers<[1], [0], [0], [1], [0, 0, 1, 1], [], []>} : vector<2x32xf32>, vector<32x128xf32>, vector<2x128xf32> -> vector<2x128xf32>
      %32 = arith.addf %28, %31 : vector<2x128xf32>
      %33 = vector.extract_strided_slice %25 {offsets = [0, 0], sizes = [2, 32], strides = [1, 1]} : vector<2x128xf32> to vector<2x32xf32>
      %34 = arith.negf %33 : vector<2x32xf32>
      %35 = math.exp %34 : vector<2x32xf32>
      %cst_29 = arith.constant 1.000000e+00 : f32
      %36 = vector.broadcast %cst_29 : f32 to vector<2x32xf32>
      %37 = arith.addf %36, %35 : vector<2x32xf32>
      %38 = arith.divf %36, %37 : vector<2x32xf32>
      %39 = vector.extract_strided_slice %25 {offsets = [0, 32], sizes = [2, 32], strides = [1, 1]} : vector<2x128xf32> to vector<2x32xf32>
      %40 = arith.negf %39 : vector<2x32xf32>
      %41 = math.exp %40 : vector<2x32xf32>
      %cst_30 = arith.constant 1.000000e+00 : f32
      %42 = vector.broadcast %cst_30 : f32 to vector<2x32xf32>
      %43 = arith.addf %42, %41 : vector<2x32xf32>
      %44 = arith.divf %42, %43 : vector<2x32xf32>
      %45 = vector.extract_strided_slice %25 {offsets = [0, 64], sizes = [2, 32], strides = [1, 1]} : vector<2x128xf32> to vector<2x32xf32>
      %46 = math.tanh %45 : vector<2x32xf32>
      %47 = vector.extract_strided_slice %25 {offsets = [0, 96], sizes = [2, 32], strides = [1, 1]} : vector<2x128xf32> to vector<2x32xf32>
      %48 = arith.negf %47 : vector<2x32xf32>
      %49 = math.exp %48 : vector<2x32xf32>
      %cst_31 = arith.constant 1.000000e+00 : f32
      %50 = vector.broadcast %cst_31 : f32 to vector<2x32xf32>
      %51 = arith.addf %50, %49 : vector<2x32xf32>
      %52 = arith.divf %50, %51 : vector<2x32xf32>
      %53 = arith.mulf %44, %arg12 : vector<2x32xf32>
      %54 = arith.mulf %38, %46 : vector<2x32xf32>
      %55 = arith.addf %53, %54 : vector<2x32xf32>
      %56 = math.tanh %55 : vector<2x32xf32>
      %57 = arith.mulf %52, %56 : vector<2x32xf32>
      %58 = vector.extract_strided_slice %32 {offsets = [0, 0], sizes = [2, 32], strides = [1, 1]} : vector<2x128xf32> to vector<2x32xf32>
      %59 = arith.negf %58 : vector<2x32xf32>
      %60 = math.exp %59 : vector<2x32xf32>
      %cst_32 = arith.constant 1.000000e+00 : f32
      %61 = vector.broadcast %cst_32 : f32 to vector<2x32xf32>
      %62 = arith.addf %61, %60 : vector<2x32xf32>
      %63 = arith.divf %61, %62 : vector<2x32xf32>
      %64 = vector.extract_strided_slice %32 {offsets = [0, 32], sizes = [2, 32], strides = [1, 1]} : vector<2x128xf32> to vector<2x32xf32>
      %65 = arith.negf %64 : vector<2x32xf32>
      %66 = math.exp %65 : vector<2x32xf32>
      %cst_33 = arith.constant 1.000000e+00 : f32
      %67 = vector.broadcast %cst_33 : f32 to vector<2x32xf32>
      %68 = arith.addf %67, %66 : vector<2x32xf32>
      %69 = arith.divf %67, %68 : vector<2x32xf32>
      %70 = vector.extract_strided_slice %32 {offsets = [0, 64], sizes = [2, 32], strides = [1, 1]} : vector<2x128xf32> to vector<2x32xf32>
      %71 = math.tanh %70 : vector<2x32xf32>
      %72 = vector.extract_strided_slice %32 {offsets = [0, 96], sizes = [2, 32], strides = [1, 1]} : vector<2x128xf32> to vector<2x32xf32>
      %73 = arith.negf %72 : vector<2x32xf32>
      %74 = math.exp %73 : vector<2x32xf32>
      %cst_34 = arith.constant 1.000000e+00 : f32
      %75 = vector.broadcast %cst_34 : f32 to vector<2x32xf32>
      %76 = arith.addf %75, %74 : vector<2x32xf32>
      %77 = arith.divf %75, %76 : vector<2x32xf32>
      %78 = arith.mulf %69, %arg14 : vector<2x32xf32>
      %79 = arith.mulf %63, %71 : vector<2x32xf32>
      %80 = arith.addf %78, %79 : vector<2x32xf32>
      %81 = math.tanh %80 : vector<2x32xf32>
      %82 = arith.mulf %77, %81 : vector<2x32xf32>
      %83 = vector.shape_cast %57 : vector<2x32xf32> to vector<1x2x32xf32>
      %c0_35 = arith.constant 0 : index
      %84 = arith.index_cast %arg10 : i32 to index
      %c0_36 = arith.constant 0 : index
      %c0_37 = arith.constant 0 : index
      %85 = vector.load %arg6[%c0_35, %84, %c0_36, %c0_37] : memref<1x8x2x32xf32, #tpu.memory_space<vmem>>, vector<1x1x2x32xf32>
      %86 = vector.shape_cast %85 : vector<1x1x2x32xf32> to vector<1x2x32xf32>
      %87 = vector.shape_cast %83 : vector<1x2x32xf32> to vector<1x1x2x32xf32>
      tpu.vector_store %arg6[%c0_35, %84, %c0_36, %c0_37], %87 {strides = array<i32>} : memref<1x8x2x32xf32, #tpu.memory_space<vmem>>, vector<1x1x2x32xf32>,
      %88 = vector.shape_cast %82 : vector<2x32xf32> to vector<1x2x32xf32>
      %c0_38 = arith.constant 0 : index
      %89 = arith.index_cast %18 : i32 to index
      %c0_39 = arith.constant 0 : index
      %c0_40 = arith.constant 0 : index
      %90 = vector.load %arg7[%c0_38, %89, %c0_39, %c0_40] : memref<1x8x2x32xf32, #tpu.memory_space<vmem>>, vector<1x1x2x32xf32>
      %91 = vector.shape_cast %90 : vector<1x1x2x32xf32> to vector<1x2x32xf32>
      %92 = vector.shape_cast %88 : vector<1x2x32xf32> to vector<1x1x2x32xf32>
      tpu.vector_store %arg7[%c0_38, %89, %c0_39, %c0_40], %92 {strides = array<i32>} : memref<1x8x2x32xf32, #tpu.memory_space<vmem>>, vector<1x1x2x32xf32>,
      scf.yield %57, %55, %82, %80 : vector<2x32xf32>, vector<2x32xf32>, vector<2x32xf32>, vector<2x32xf32>
    }
    %c8_i32_16 = arith.constant 8 : i32
    return
  }
  func.func @transform_0(%arg0: i32) -> (i32, i32, i32, i32) {
    %c0_i32 = arith.constant 0 : i32
    %c0_i32_0 = arith.constant 0 : i32
    %c0_i32_1 = arith.constant 0 : i32
    %c0_i32_2 = arith.constant 0 : i32
    return %arg0, %c0_i32, %c0_i32_0, %c0_i32_1 : i32, i32, i32, i32
  }
  func.func @transform_1(%arg0: i32) -> (i32, i32, i32) {
    %c0_i32 = arith.constant 0 : i32
    %c0_i32_0 = arith.constant 0 : i32
    %c0_i32_1 = arith.constant 0 : i32
    return %arg0, %c0_i32, %c0_i32_0 : i32, i32, i32
  }
  func.func @transform_2(%arg0: i32) -> (i32, i32, i32) {
    %c0_i32 = arith.constant 0 : i32
    %c0_i32_0 = arith.constant 0 : i32
    %c0_i32_1 = arith.constant 0 : i32
    return %arg0, %c0_i32, %c0_i32_0 : i32, i32, i32
  }
  func.func @transform_3(%arg0: i32) -> (i32, i32, i32) {
    %c0_i32 = arith.constant 0 : i32
    %c0_i32_0 = arith.constant 0 : i32
    %c0_i32_1 = arith.constant 0 : i32
    return %arg0, %c0_i32, %c0_i32_0 : i32, i32, i32
  }
  func.func @transform_4(%arg0: i32) -> (i32, i32, i32) {
    %c0_i32 = arith.constant 0 : i32
    %c0_i32_0 = arith.constant 0 : i32
    %c0_i32_1 = arith.constant 0 : i32
    return %arg0, %c0_i32, %c0_i32_0 : i32, i32, i32
  }
  func.func @transform_5(%arg0: i32) -> (i32, i32, i32, i32) {
    %c0_i32 = arith.constant 0 : i32
    %c0_i32_0 = arith.constant 0 : i32
    %c0_i32_1 = arith.constant 0 : i32
    %c0_i32_2 = arith.constant 0 : i32
    return %arg0, %c0_i32, %c0_i32_0, %c0_i32_1 : i32, i32, i32, i32
  }
  func.func @transform_6(%arg0: i32) -> (i32, i32, i32, i32) {
    %c0_i32 = arith.constant 0 : i32
    %c0_i32_0 = arith.constant 0 : i32
    %c0_i32_1 = arith.constant 0 : i32
    %c0_i32_2 = arith.constant 0 : i32
    return %arg0, %c0_i32, %c0_i32_0, %c0_i32_1 : i32, i32, i32, i32
  }
}

</mosaic_0001>

<llo_original>
// kernel: context_response_encoding.2
$region0: #{context_response_encoding.2}
  #allocation0 [shape = 'u32[]', space=smem, size = 0x4, offset = 0x4, fixed_abs, tag = 'smem constant byte address 0x4 - core index']
  #allocation1 [shape = 'u32[72,128]{1,0:T(1,128)}', space=vmem, size = 0x9000, scoped, tag = 'internal scratch']
  %s0 = inlined_call_operand.vmem [shape: f32[32,144], index: 0, kind: input, shape index: {}]
  %s1 = inlined_call_operand.vmem [shape: f32[144,32], index: 1, kind: input, shape index: {}]
  %s2 = inlined_call_operand.vmem [shape: f32[1,32], index: 2, kind: input, shape index: {}]
  %s3 = inlined_call_operand.vmem [shape: f32[32,32], index: 3, kind: output, shape index: {}]
  %s4 = sld [smem:[#allocation0]]
  $region22: #{context_response_encoding.2} parent=0
    _
  %s6 = ssub.s32 1, %s4
  %s7 = scalar_select 0, %s6, %s4
  // Predicated region
  $region2: #{context_response_encoding.2} parent=0 // pred_check
    _
  $region3: #{context_response_encoding.2} parent=0 // pred_check_branch
    %9 = sbr.rel (0) target = $region5
  $region4: #{context_response_encoding.2} parent=0 // pred_region
    _
  $region5: #{context_response_encoding.2} parent=0 // pred_fallthru
    _
  // Predicated region
  $region6: #{context_response_encoding.2} parent=0 // pred_check
    _
  $region7: #{context_response_encoding.2} parent=0 // pred_check_branch
    %11 = sbr.rel (0) target = $region9
  $region8: #{context_response_encoding.2} parent=0 // pred_region
    _
  $region9: #{context_response_encoding.2} parent=0 // pred_fallthru
    _
  // Predicated region
  $region10: #{context_response_encoding.2} parent=0 // pred_check
    _
  $region11: #{context_response_encoding.2} parent=0 // pred_check_branch
    %13 = sbr.rel (0) target = $region13
  $region12: #{context_response_encoding.2} parent=0 // pred_region
    _
  $region13: #{context_response_encoding.2} parent=0 // pred_fallthru
    _
  %v14 = vld [vmem:[%s0] sm:$0xff]
  %v15 = vld [vmem:[%s0 + $0x8] sm:$0xff]
  %v16 = vld [vmem:[%s0 + $0x10] sm:$0xff]
  %v17 = vld [vmem:[%s0 + $0x18] sm:$0xff]
  %v18 = vld [vmem:[%s0 + $0x20] sm:$0xff]
  %v19 = vld [vmem:[%s0 + $0x28] sm:$0xff]
  %v20 = vld [vmem:[%s0 + $0x30] sm:$0xff]
  %v21 = vld [vmem:[%s0 + $0x38] sm:$0xff]
  %v22 = vld [vmem:[%s1] sm:$0xff]
  %v23 = vld [vmem:[%s1 + $0x8] sm:$0xff]
  %v24 = vld [vmem:[%s1 + $0x10] sm:$0xff]
  %v25 = vld [vmem:[%s1 + $0x18] sm:$0xff]
  %v26 = vld [vmem:[%s1 + $0x20] sm:$0xff]
  %v27 = vld [vmem:[%s1 + $0x28] sm:$0xff]
  %v28 = vld [vmem:[%s1 + $0x30] sm:$0xff]
  %v29 = vld [vmem:[%s1 + $0x38] sm:$0xff]
  %v30 = vld [vmem:[%s1 + $0x40] sm:$0xff]
  %v31 = vld [vmem:[%s1 + $0x48] sm:$0xff]
  %v32 = vld [vmem:[%s1 + $0x50] sm:$0xff]
  %v33 = vld [vmem:[%s1 + $0x58] sm:$0xff]
  %v34 = vld [vmem:[%s1 + $0x60] sm:$0xff]
  %v35 = vld [vmem:[%s1 + $0x68] sm:$0xff]
  %v36 = vld [vmem:[%s1 + $0x70] sm:$0xff]
  %v37 = vld [vmem:[%s1 + $0x78] sm:$0xff]
  %v38 = vld [vmem:[%s1 + $0x80] sm:$0xff]
  %v39 = vld [vmem:[%s1 + $0x88] sm:$0xff]
  %v40 = vld [vmem:[%s2] sm:$0x1]
  %v42 = vperm.slane %v40, 0
  %vm44 = vcmask 130048
  %v46 = vsel %vm44, %v15, 0
  %v49 = vsel %vm44, %v17, 0
  %v52 = vsel %vm44, %v19, 0
  %v55 = vsel %vm44, %v21, 0
  %57 = vmatpush.msra.mxu0 %v37
  %58 = vmatpush.msra.mxu0 %v36
  %59 = vmatpush.msra.mxu0 %v35
  %60 = vmatpush.msra.mxu0 %v34
  %61 = vmatpush.msra.mxu0 %v33
  %62 = vmatpush.msra.mxu0 %v32
  %63 = vmatpush.msra.mxu0 %v31
  %64 = vmatpush.msra.mxu0 %v30
  %65 = vmatpush.msra.mxu0 %v29
  %66 = vmatpush.msra.mxu0 %v28
  %67 = vmatpush.msra.mxu0 %v27
  %68 = vmatpush.msra.mxu0 %v26
  %69 = vmatpush.msra.mxu0 %v25
  %70 = vmatpush.msra.mxu0 %v24
  %71 = vmatpush.msra.mxu0 %v23
  %72 = vmatpush.msra.mxu0 %v22
  %73 = vmatmul.f32.gmra.mxu0 %v14
  %v74 = vpop.f32.mrf.mxu0
  %v75 = vadd.f32 %v42, %v74
  %76 = vmatmul.f32.gmra.mxu0 %v16
  %v77 = vpop.f32.mrf.mxu0
  %v78 = vadd.f32 %v42, %v77
  %79 = vmatmul.f32.gmra.mxu0 %v18
  %v80 = vpop.f32.mrf.mxu0
  %v81 = vadd.f32 %v42, %v80
  %82 = vmatmul.f32.gmra.mxu0 %v20
  %v83 = vpop.f32.mrf.mxu0
  %v84 = vadd.f32 %v42, %v83
  %85 = vdwg.mxu0
  %86 = vmatpush.msra.mxu0 0.0
  %87 = vmatpush.msra.mxu0 0.0
  %88 = vmatpush.msra.mxu0 0.0
  %89 = vmatpush.msra.mxu0 0.0
  %90 = vmatpush.msra.mxu0 0.0
  %91 = vmatpush.msra.mxu0 0.0
  %92 = vmatpush.msra.mxu0 0.0
  %93 = vmatpush.msra.mxu0 0.0
  %94 = vmatpush.msra.mxu0 0.0
  %95 = vmatpush.msra.mxu0 0.0
  %96 = vmatpush.msra.mxu0 0.0
  %97 = vmatpush.msra.mxu0 0.0
  %98 = vmatpush.msra.mxu0 0.0
  %99 = vmatpush.msra.mxu0 0.0
  %100 = vmatpush.msra.mxu0 %v39
  %101 = vmatpush.msra.mxu0 %v38
  %102 = vmatmul.f32.gmra.mxu0 %v46
  %v103 = vpop.f32.mrf.mxu0
  %v104 = vadd.f32 %v75, %v103
  %105 = vmatmul.f32.gmra.mxu0 %v49
  %v106 = vpop.f32.mrf.mxu0
  %v107 = vadd.f32 %v78, %v106
  %108 = vmatmul.f32.gmra.mxu0 %v52
  %v109 = vpop.f32.mrf.mxu0
  %v110 = vadd.f32 %v81, %v109
  %111 = vmatmul.f32.gmra.mxu0 %v55
  %v112 = vpop.f32.mrf.mxu0
  %v113 = vadd.f32 %v84, %v112
  %114 = vdwg.mxu0
  %v115 = vmax.f32 %v104, 0.0
  %v116 = vmax.f32 %v107, 0.0
  %v117 = vmax.f32 %v110, 0.0
  %v118 = vmax.f32 %v113, 0.0
  %vm119 = vcmask 261120
  %120 = vst.msk [vmem:[%s3] sm:$0xff] %vm119, %v115
  %121 = vst.msk [vmem:[%s3 + $0x8] sm:$0xff] %vm119, %v116
  %122 = vst.msk [vmem:[%s3 + $0x10] sm:$0xff] %vm119, %v117
  %123 = vst.msk [vmem:[%s3 + $0x18] sm:$0xff] %vm119, %v118
  // Predicated region
  $region14: #{context_response_encoding.2} parent=0 // pred_check
    _
  $region15: #{context_response_encoding.2} parent=0 // pred_check_branch
    %125 = sbr.rel (0) target = $region17
  $region16: #{context_response_encoding.2} parent=0 // pred_region
    _
  $region17: #{context_response_encoding.2} parent=0 // pred_fallthru
    _
  // Predicated region
  $region18: #{context_response_encoding.2} parent=0 // pred_check
    _
  $region19: #{context_response_encoding.2} parent=0 // pred_check_branch
    %127 = sbr.rel (0) target = $region21
  $region20: #{context_response_encoding.2} parent=0 // pred_region
    _
  $region21: #{context_response_encoding.2} parent=0 // pred_fallthru
    _

// kernel: context_response_encoding.3
$region0: #{context_response_encoding.3}
  #allocation0 [shape = 'u32[]', space=smem, size = 0x4, offset = 0x4, fixed_abs, tag = 'smem constant byte address 0x4 - core index']
  #allocation1 [shape = 'u32[72,128]{1,0:T(1,128)}', space=vmem, size = 0x9000, scoped, tag = 'internal scratch']
  #allocation2 [shape = 'f32[8,2,128]{2,1,0:T(2,128)}', space=vmem, size = 0x2000, scoped, tag = 'scratch operand']
  #allocation3 [shape = 'f32[8,2,128]{2,1,0:T(2,128)}', space=vmem, size = 0x2000, scoped, tag = 'scratch operand']
  %s0 = inlined_call_operand.vmem [shape: f32[2,8,2,32], index: 0, kind: input, shape index: {}]
  %s1 = inlined_call_operand.vmem [shape: f32[2,32,256], index: 1, kind: input, shape index: {}]
  %s2 = inlined_call_operand.vmem [shape: f32[2,32,128], index: 2, kind: input, shape index: {}]
  %s3 = inlined_call_operand.vmem [shape: f32[2,32,128], index: 3, kind: input, shape index: {}]
  %s4 = inlined_call_operand.vmem [shape: f32[2,1,256], index: 4, kind: input, shape index: {}]
  %s5 = inlined_call_operand.vmem [shape: f32[2,8,2,32], index: 5, kind: output, shape index: {0}]
  %s6 = inlined_call_operand.vmem [shape: f32[2,8,2,32], index: 6, kind: output, shape index: {1}]
  %7 = xla_tuple %s5, %s6
  %s8 = sld [smem:[#allocation0]]
  $region68: #{context_response_encoding.3} parent=0
    _
  %s10 = ssub.s32 1, %s8
  %s11 = scalar_select 0, %s10, %s8
  loop: start=0, step=1, limit=4
  $region2: #{context_response_encoding.3} parent=0 // loop_pre_header
    _
  $region3: #{context_response_encoding.3} parent=0 // loop_header
    %s13 = sphi 0, %s17
    %p14 = scmp.ge.s32.totalorder %s13, 4
    %s23 = sphi 0, %s25
    %s26 = sphi 0, %s23
    %s27 = sphi 0, %s26
    %s43 = sphi 0, %s27
    %s49 = sphi 0, %s51
    %s52 = sphi 0, %s49
    %s53 = sphi 0, %s52
    %s69 = sphi 0, %s53
    %s75 = sphi 0, %s77
    %s78 = sphi 0, %s75
    %s79 = sphi 0, %s78
    %s95 = sphi 0, %s79
    %s101 = sphi 0, %s103
    %s104 = sphi 0, %s101
    %s105 = sphi 0, %s104
    %s121 = sphi 0, %s105
    %s127 = sphi 0, %s129
    %s130 = sphi 0, %s127
    %s131 = sphi 0, %s130
    %s147 = sphi 0, %s131
    %s153 = sphi 0, %s155
    %s156 = sphi 0, %s153
    %s157 = sphi 0, %s156
    %s173 = sphi 0, %s157
    %s179 = sphi 0, %s181
    %s182 = sphi 0, %s179
    %s183 = sphi 0, %s182
    %s199 = sphi 0, %s183
  $region4: #{context_response_encoding.3} parent=0 // loop_header_branch
    %16 = sbr.rel (%p14) target = $region8
  $region5: #{context_response_encoding.3} parent=0 // loop_body
    %s18 = ssub.s32 %s13, 1
    %s19 = ssub.s32 %s13, 2
    %s20 = sadd.s32 %s13, 1
    %s21 = ssub.s32 %s13, %s20
    %p22 = scmp.eq.s32.totalorder %s21, 0
    %s24 = sadd.s32 %s23, 1
    %s25 = scalar_select %p22, %s23, %s24
    %p28 = pneg %p22
    %p29 = scmp.eq.s32.totalorder %s13, 1
    %p30 = por %p28, %p29
    %p31 = scmp.ne.s32.totalorder %s23, %s26
    %p32 = scmp.eq.s32.totalorder %s13, 0
    %p33 = por %p31, %p32
    %p34 = scmp.ne.s32.totalorder %s23, %s26
    %p35 = scmp.eq.s32.totalorder %s18, 1
    %p36 = por %p34, %p35
    %p37 = scmp.ne.s32.totalorder %s26, %s27
    %p38 = scmp.eq.s32.totalorder %s18, 0
    %p39 = por %p37, %p38
    %p40 = scmp.ne.s32.totalorder %s26, %s27
    %p41 = scmp.eq.s32.totalorder %s19, 1
    %p42 = por %p40, %p41
    %p44 = scmp.ne.s32.totalorder %s27, %s43
    %p45 = scmp.eq.s32.totalorder %s19, 0
    %p46 = por %p44, %p45
    %s47 = ssub.s32 %s13, %s20
    %p48 = scmp.eq.s32.totalorder %s47, 0
    %s50 = sadd.s32 %s49, 1
    %s51 = scalar_select %p48, %s49, %s50
    %p54 = pneg %p48
    %p55 = scmp.eq.s32.totalorder %s13, 1
    %p56 = por %p54, %p55
    %p57 = scmp.ne.s32.totalorder %s49, %s52
    %p58 = scmp.eq.s32.totalorder %s13, 0
    %p59 = por %p57, %p58
    %p60 = scmp.ne.s32.totalorder %s49, %s52
    %p61 = scmp.eq.s32.totalorder %s18, 1
    %p62 = por %p60, %p61
    %p63 = scmp.ne.s32.totalorder %s52, %s53
    %p64 = scmp.eq.s32.totalorder %s18, 0
    %p65 = por %p63, %p64
    %p66 = scmp.ne.s32.totalorder %s52, %s53
    %p67 = scmp.eq.s32.totalorder %s19, 1
    %p68 = por %p66, %p67
    %p70 = scmp.ne.s32.totalorder %s53, %s69
    %p71 = scmp.eq.s32.totalorder %s19, 0
    %p72 = por %p70, %p71
    %s73 = ssub.s32 %s13, %s20
    %p74 = scmp.eq.s32.totalorder %s73, 0
    %s76 = sadd.s32 %s75, 1
    %s77 = scalar_select %p74, %s75, %s76
    %p80 = pneg %p74
    %p81 = scmp.eq.s32.totalorder %s13, 1
    %p82 = por %p80, %p81
    %p83 = scmp.ne.s32.totalorder %s75, %s78
    %p84 = scmp.eq.s32.totalorder %s13, 0
    %p85 = por %p83, %p84
    %p86 = scmp.ne.s32.totalorder %s75, %s78
    %p87 = scmp.eq.s32.totalorder %s18, 1
    %p88 = por %p86, %p87
    %p89 = scmp.ne.s32.totalorder %s78, %s79
    %p90 = scmp.eq.s32.totalorder %s18, 0
    %p91 = por %p89, %p90
    %p92 = scmp.ne.s32.totalorder %s78, %s79
    %p93 = scmp.eq.s32.totalorder %s19, 1
    %p94 = por %p92, %p93
    %p96 = scmp.ne.s32.totalorder %s79, %s95
    %p97 = scmp.eq.s32.totalorder %s19, 0
    %p98 = por %p96, %p97
    %s99 = ssub.s32 %s13, %s20
    %p100 = scmp.eq.s32.totalorder %s99, 0
    %s102 = sadd.s32 %s101, 1
    %s103 = scalar_select %p100, %s101, %s102
    %p106 = pneg %p100
    %p107 = scmp.eq.s32.totalorder %s13, 1
    %p108 = por %p106, %p107
    %p109 = scmp.ne.s32.totalorder %s101, %s104
    %p110 = scmp.eq.s32.totalorder %s13, 0
    %p111 = por %p109, %p110
    %p112 = scmp.ne.s32.totalorder %s101, %s104
    %p113 = scmp.eq.s32.totalorder %s18, 1
    %p114 = por %p112, %p113
    %p115 = scmp.ne.s32.totalorder %s104, %s105
    %p116 = scmp.eq.s32.totalorder %s18, 0
    %p117 = por %p115, %p116
    %p118 = scmp.ne.s32.totalorder %s104, %s105
    %p119 = scmp.eq.s32.totalorder %s19, 1
    %p120 = por %p118, %p119
    %p122 = scmp.ne.s32.totalorder %s105, %s121
    %p123 = scmp.eq.s32.totalorder %s19, 0
    %p124 = por %p122, %p123
    %s125 = ssub.s32 %s13, %s20
    %p126 = scmp.eq.s32.totalorder %s125, 0
    %s128 = sadd.s32 %s127, 1
    %s129 = scalar_select %p126, %s127, %s128
    %p132 = pneg %p126
    %p133 = scmp.eq.s32.totalorder %s13, 1
    %p134 = por %p132, %p133
    %p135 = scmp.ne.s32.totalorder %s127, %s130
    %p136 = scmp.eq.s32.totalorder %s13, 0
    %p137 = por %p135, %p136
    %p138 = scmp.ne.s32.totalorder %s127, %s130
    %p139 = scmp.eq.s32.totalorder %s18, 1
    %p140 = por %p138, %p139
    %p141 = scmp.ne.s32.totalorder %s130, %s131
    %p142 = scmp.eq.s32.totalorder %s18, 0
    %p143 = por %p141, %p142
    %p144 = scmp.ne.s32.totalorder %s130, %s131
    %p145 = scmp.eq.s32.totalorder %s19, 1
    %p146 = por %p144, %p145
    %p148 = scmp.ne.s32.totalorder %s131, %s147
    %p149 = scmp.eq.s32.totalorder %s19, 0
    %p150 = por %p148, %p149
    %s151 = ssub.s32 %s13, %s20
    %p152 = scmp.eq.s32.totalorder %s151, 0
    %s154 = sadd.s32 %s153, 1
    %s155 = scalar_select %p152, %s153, %s154
    %p158 = pneg %p152
    %p159 = scmp.eq.s32.totalorder %s13, 1
    %p160 = por %p158, %p159
    %p161 = scmp.ne.s32.totalorder %s153, %s156
    %p162 = scmp.eq.s32.totalorder %s13, 0
    %p163 = por %p161, %p162
    %p164 = scmp.ne.s32.totalorder %s153, %s156
    %p165 = scmp.eq.s32.totalorder %s18, 1
    %p166 = por %p164, %p165
    %p167 = scmp.ne.s32.totalorder %s156, %s157
    %p168 = scmp.eq.s32.totalorder %s18, 0
    %p169 = por %p167, %p168
    %p170 = scmp.ne.s32.totalorder %s156, %s157
    %p171 = scmp.eq.s32.totalorder %s19, 1
    %p172 = por %p170, %p171
    %p174 = scmp.ne.s32.totalorder %s157, %s173
    %p175 = scmp.eq.s32.totalorder %s19, 0
    %p176 = por %p174, %p175
    %s177 = ssub.s32 %s13, %s20
    %p178 = scmp.eq.s32.totalorder %s177, 0
    %s180 = sadd.s32 %s179, 1
    %s181 = scalar_select %p178, %s179, %s180
    %p184 = pneg %p178
    %p185 = scmp.eq.s32.totalorder %s13, 1
    %p186 = por %p184, %p185
    %p187 = scmp.ne.s32.totalorder %s179, %s182
    %p188 = scmp.eq.s32.totalorder %s13, 0
    %p189 = por %p187, %p188
    %p190 = scmp.ne.s32.totalorder %s179, %s182
    %p191 = scmp.eq.s32.totalorder %s18, 1
    %p192 = por %p190, %p191
    %p193 = scmp.ne.s32.totalorder %s182, %s183
    %p194 = scmp.eq.s32.totalorder %s18, 0
    %p195 = por %p193, %p194
    %p196 = scmp.ne.s32.totalorder %s182, %s183
    %p197 = scmp.eq.s32.totalorder %s19, 1
    %p198 = por %p196, %p197
    %p200 = scmp.ne.s32.totalorder %s183, %s199
    %p201 = scmp.eq.s32.totalorder %s19, 0
    %p202 = por %p200, %p201
    %p203 = scmp.le.s32.totalorder 1, %s13
    %p204 = scmp.lt.s32.totalorder %s13, 3
    %p205 = pnand %p203, %p204
    %p206 = pneg %p205
    // Predicated region
    $region9: #{context_response_encoding.3} parent=5 // pred_check
      _
    $region10: #{context_response_encoding.3} parent=5 // pred_check_branch
      %208 = sbr.rel (%p205) target = $region12
    $region11: #{context_response_encoding.3} parent=5 // pred_region
      %s209 = ssub.s32 %s13, 1
    $region12: #{context_response_encoding.3} parent=5 // pred_fallthru
      _
    %p210 = scmp.lt.s32.totalorder %s13, 2
    // Predicated region
    $region13: #{context_response_encoding.3} parent=5 // pred_check
      %p211 = pneg %p210
    $region14: #{context_response_encoding.3} parent=5 // pred_check_branch
      %213 = sbr.rel (%p211) target = $region16
    $region15: #{context_response_encoding.3} parent=5 // pred_region
      // Predicated region
      $region17: #{context_response_encoding.3} parent=15 // pred_check
        %p214 = pneg %p33
      $region18: #{context_response_encoding.3} parent=15 // pred_check_branch
        %216 = sbr.rel (%p214) target = $region20
      $region19: #{context_response_encoding.3} parent=15 // pred_region
        %p217 = scmp.lt.s32.totalorder %s13, 1
        %s218 = scalar_select %p217, %s13, 1
        %s219 = smul.addr %s218, 8
        %s220 = smul.addr %s219, 2
        %s221 = scalar_lea.vmem %s0, %s220
      $region20: #{context_response_encoding.3} parent=15 // pred_fallthru
        _
      // Predicated region
      $region21: #{context_response_encoding.3} parent=15 // pred_check
        %p222 = pneg %p59
      $region22: #{context_response_encoding.3} parent=15 // pred_check_branch
        %224 = sbr.rel (%p222) target = $region24
      $region23: #{context_response_encoding.3} parent=15 // pred_region
        %p225 = scmp.lt.s32.totalorder %s13, 1
        %s226 = scalar_select %p225, %s13, 1
        %s227 = smul.addr %s226, 8
        %s228 = smul.addr %s227, 8
        %s229 = scalar_lea.vmem %s1, %s228
      $region24: #{context_response_encoding.3} parent=15 // pred_fallthru
        _
      // Predicated region
      $region25: #{context_response_encoding.3} parent=15 // pred_check
        %p230 = pneg %p85
      $region26: #{context_response_encoding.3} parent=15 // pred_check_branch
        %232 = sbr.rel (%p230) target = $region28
      $region27: #{context_response_encoding.3} parent=15 // pred_region
        %p233 = scmp.lt.s32.totalorder %s13, 1
        %s234 = scalar_select %p233, %s13, 1
        %s235 = smul.addr %s234, 4
        %s236 = smul.addr %s235, 8
        %s237 = scalar_lea.vmem %s2, %s236
      $region28: #{context_response_encoding.3} parent=15 // pred_fallthru
        _
      // Predicated region
      $region29: #{context_response_encoding.3} parent=15 // pred_check
        %p238 = pneg %p111
      $region30: #{context_response_encoding.3} parent=15 // pred_check_branch
        %240 = sbr.rel (%p238) target = $region32
      $region31: #{context_response_encoding.3} parent=15 // pred_region
        %p241 = scmp.lt.s32.totalorder %s13, 1
        %s242 = scalar_select %p241, %s13, 1
        %s243 = smul.addr %s242, 4
        %s244 = smul.addr %s243, 8
        %s245 = scalar_lea.vmem %s3, %s244
      $region32: #{context_response_encoding.3} parent=15 // pred_fallthru
        _
      // Predicated region
      $region33: #{context_response_encoding.3} parent=15 // pred_check
        %p246 = pneg %p137
      $region34: #{context_response_encoding.3} parent=15 // pred_check_branch
        %248 = sbr.rel (%p246) target = $region36
      $region35: #{context_response_encoding.3} parent=15 // pred_region
        %p249 = scmp.lt.s32.totalorder %s13, 1
        %s250 = scalar_select %p249, %s13, 1
        %s251 = smul.addr %s250, 2
        %s252 = scalar_lea.vmem %s4, %s251
      $region36: #{context_response_encoding.3} parent=15 // pred_fallthru
        _
    $region16: #{context_response_encoding.3} parent=5 // pred_fallthru
      _
    %p253 = scmp.le.s32.totalorder 1, %s13
    %p254 = scmp.lt.s32.totalorder %s13, 3
    %p255 = pnand %p253, %p254
    %p256 = pneg %p255
    // Predicated region
    $region37: #{context_response_encoding.3} parent=5 // pred_check
      _
    $region38: #{context_response_encoding.3} parent=5 // pred_check_branch
      %258 = sbr.rel (%p255) target = $region40
    $region39: #{context_response_encoding.3} parent=5 // pred_region
      %s259 = ssub.s32 %s13, 1
      %p260 = scmp.lt.s32.totalorder %s18, 1
      %s261 = scalar_select %p260, %s18, 1
      %s262 = smul.addr %s261, 8
      %s263 = smul.addr %s262, 2
      %s264 = scalar_lea.vmem %s0, %s263
      %p265 = pneg %p39
      %p266 = pneg %p36
      %p267 = scmp.lt.s32.totalorder %s18, 1
      %s268 = scalar_select %p267, %s18, 1
      %s269 = smul.addr %s268, 8
      %s270 = smul.addr %s269, 8
      %s271 = scalar_lea.vmem %s1, %s270
      %p272 = pneg %p65
      %p273 = pneg %p62
      %p274 = scmp.lt.s32.totalorder %s18, 1
      %s275 = scalar_select %p274, %s18, 1
      %s276 = smul.addr %s275, 4
      %s277 = smul.addr %s276, 8
      %s278 = scalar_lea.vmem %s2, %s277
      %p279 = pneg %p91
      %p280 = pneg %p88
      %p281 = scmp.lt.s32.totalorder %s18, 1
      %s282 = scalar_select %p281, %s18, 1
      %s283 = smul.addr %s282, 4
      %s284 = smul.addr %s283, 8
      %s285 = scalar_lea.vmem %s3, %s284
      %p286 = pneg %p117
      %p287 = pneg %p114
      %p288 = scmp.lt.s32.totalorder %s18, 1
      %s289 = scalar_select %p288, %s18, 1
      %s290 = smul.addr %s289, 2
      %s291 = scalar_lea.vmem %s4, %s290
      %p292 = pneg %p143
      %p293 = pneg %p140
      %p294 = pneg %p169
      %p295 = pneg %p166
      %p296 = scmp.lt.s32.totalorder %s18, 1
      %s297 = scalar_select %p296, %s18, 1
      %s298 = smul.addr %s297, 8
      %s299 = smul.addr %s298, 2
      %s300 = scalar_lea.vmem %s5, %s299
      %p301 = pneg %p195
      %p302 = pneg %p192
      %p303 = scmp.lt.s32.totalorder %s18, 1
      %s304 = scalar_select %p303, %s18, 1
      %s305 = smul.addr %s304, 8
      %s306 = smul.addr %s305, 2
      %s307 = scalar_lea.vmem %s6, %s306
      %p308 = scmp.lt.s32.totalorder %s18, 1
      %s309 = scalar_select %p308, %s18, 1
      %s310 = smul.addr %s309, 8
      %s311 = smul.addr %s310, 2
      %s312 = scalar_lea.vmem %s0, %s311
      %p313 = scmp.lt.s32.totalorder %s18, 1
      %s314 = scalar_select %p313, %s18, 1
      %s315 = smul.addr %s314, 8
      %s316 = smul.addr %s315, 8
      %s317 = scalar_lea.vmem %s1, %s316
      %p318 = scmp.lt.s32.totalorder %s18, 1
      %s319 = scalar_select %p318, %s18, 1
      %s320 = smul.addr %s319, 4
      %s321 = smul.addr %s320, 8
      %s322 = scalar_lea.vmem %s2, %s321
      %p323 = scmp.lt.s32.totalorder %s18, 1
      %s324 = scalar_select %p323, %s18, 1
      %s325 = smul.addr %s324, 4
      %s326 = smul.addr %s325, 8
      %s327 = scalar_lea.vmem %s3, %s326
      %p328 = scmp.lt.s32.totalorder %s18, 1
      %s329 = scalar_select %p328, %s18, 1
      %s330 = smul.addr %s329, 2
      %s331 = scalar_lea.vmem %s4, %s330
      %p332 = scmp.lt.s32.totalorder %s18, 1
      %s333 = scalar_select %p332, %s18, 1
      %s334 = smul.addr %s333, 8
      %s335 = smul.addr %s334, 2
      %s336 = scalar_lea.vmem %s5, %s335
      %p337 = scmp.lt.s32.totalorder %s18, 1
      %s338 = scalar_select %p337, %s18, 1
      %s339 = smul.addr %s338, 8
      %s340 = smul.addr %s339, 2
      %s341 = scalar_lea.vmem %s6, %s340
      %v342 = vld [vmem:[%s312] sm:$0x3]
      %v343 = vld [vmem:[%s312 + $0x2] sm:$0x3]
      %v344 = vld [vmem:[%s312 + $0x4] sm:$0x3]
      %v345 = vld [vmem:[%s312 + $0x6] sm:$0x3]
      %v346 = vld [vmem:[%s312 + $0x8] sm:$0x3]
      %v347 = vld [vmem:[%s312 + $0xa] sm:$0x3]
      %v348 = vld [vmem:[%s312 + $0xc] sm:$0x3]
      %v349 = vld [vmem:[%s312 + $0xe] sm:$0x3]
      %v350 = vld [vmem:[%s317] sm:$0xff]
      %v351 = vld [vmem:[%s317 + $0x8] sm:$0xff]
      %v352 = vld [vmem:[%s317 + $0x10] sm:$0xff]
      %v353 = vld [vmem:[%s317 + $0x18] sm:$0xff]
      %v354 = vld [vmem:[%s317 + $0x20] sm:$0xff]
      %v355 = vld [vmem:[%s317 + $0x28] sm:$0xff]
      %v356 = vld [vmem:[%s317 + $0x30] sm:$0xff]
      %v357 = vld [vmem:[%s317 + $0x38] sm:$0xff]
      %v358 = vld [vmem:[%s331] sm:$0x3]
      %v360 = vperm.slane %v358, 0
      %v361 = vperm.slane %v358, 1
      %372 = vst [vmem:[#allocation1] ss:$4 sm:$0xff] %v342
      %s373 = scalar_lea.vmem [#allocation1], 1
      %374 = vst [vmem:[%s373] ss:$4 sm:$0xff] %v343
      %s375 = scalar_lea.vmem [#allocation1], 2
      %376 = vst [vmem:[%s375] ss:$4 sm:$0xff] %v344
      %s377 = scalar_lea.vmem [#allocation1], 3
      %378 = vst [vmem:[%s377] ss:$4 sm:$0xff] %v345
      %s379 = scalar_lea.vmem [#allocation1], 32
      %380 = vst [vmem:[%s379] ss:$4 sm:$0xff] %v346
      %s381 = scalar_lea.vmem [#allocation1], 33
      %382 = vst [vmem:[%s381] ss:$4 sm:$0xff] %v347
      %s383 = scalar_lea.vmem [#allocation1], 34
      %384 = vst [vmem:[%s383] ss:$4 sm:$0xff] %v348
      %s385 = scalar_lea.vmem [#allocation1], 35
      %386 = vst [vmem:[%s385] ss:$4 sm:$0xff] %v349
      %v387 = vld.sshfl [vmem:[#allocation1] sm:$0xff pattern:$0x73625140]
      %v388 = vld.sshfl [vmem:[#allocation1 + $0x20] sm:$0xff pattern:$0x73625140]
      %vm389 = vcmask 261120
      %v390 = vsel %vm389, %v387, 0
      %v392 = vsel %vm389, %v388, 0
      %394 = vmatpush.msra.mxu0 0.0
      %395 = vmatpush.msra.mxu0 0.0
      %396 = vmatpush.msra.mxu0 0.0
      %397 = vmatpush.msra.mxu0 0.0
      %398 = vmatpush.msra.mxu0 0.0
      %399 = vmatpush.msra.mxu0 0.0
      %400 = vmatpush.msra.mxu0 0.0
      %401 = vmatpush.msra.mxu0 0.0
      %402 = vmatpush.msra.mxu0 0.0
      %403 = vmatpush.msra.mxu0 0.0
      %404 = vmatpush.msra.mxu0 0.0
      %405 = vmatpush.msra.mxu0 0.0
      %406 = vmatpush.msra.mxu0 %v356
      %407 = vmatpush.msra.mxu0 %v354
      %408 = vmatpush.msra.mxu0 %v352
      %409 = vmatpush.msra.mxu0 %v350
      %410 = vmatmul.f32.gmra.mxu0 %v390
      %v411 = vpop.f32.mrf.mxu0
      %v412 = vadd.f32 %v360, %v411
      %413 = vmatmul.f32.gmra.mxu0 %v392
      %v414 = vpop.f32.mrf.mxu0
      %v415 = vadd.f32 %v360, %v414
      %416 = vdwg.mxu0
      %417 = vmatpush.msra.mxu0 0.0
      %418 = vmatpush.msra.mxu0 0.0
      %419 = vmatpush.msra.mxu0 0.0
      %420 = vmatpush.msra.mxu0 0.0
      %421 = vmatpush.msra.mxu0 0.0
      %422 = vmatpush.msra.mxu0 0.0
      %423 = vmatpush.msra.mxu0 0.0
      %424 = vmatpush.msra.mxu0 0.0
      %425 = vmatpush.msra.mxu0 0.0
      %426 = vmatpush.msra.mxu0 0.0
      %427 = vmatpush.msra.mxu0 0.0
      %428 = vmatpush.msra.mxu0 0.0
      %429 = vmatpush.msra.mxu0 %v357
      %430 = vmatpush.msra.mxu0 %v355
      %431 = vmatpush.msra.mxu0 %v353
      %432 = vmatpush.msra.mxu0 %v351
      %433 = vmatmul.f32.gmra.mxu0 %v390
      %v434 = vpop.f32.mrf.mxu0
      %v435 = vadd.f32 %v361, %v434
      %436 = vmatmul.f32.gmra.mxu0 %v392
      %v437 = vpop.f32.mrf.mxu0
      %v438 = vadd.f32 %v361, %v437
      %439 = vdwg.mxu0
      %v444 = vrot.slane %v435, 6
      %v445 = vrot.slane %v438, 6
      %vm446 = vcmask 1041408
      %v447 = vsel %vm446, %v412, %v444
      %vm448 = vcmask 1043458
      %v449 = vsel %vm448, %v412, %v444
      %v450 = vrot.slane %v449, 2
      %vm451 = vcmask 1045508
      %v452 = vsel %vm451, %v412, %v444
      %v453 = vrot.slane %v452, 4
      %vm454 = vcmask 1045504
      %v455 = vsel %vm454, %v444, %v412
      %v456 = vrot.slane %v455, 6
      %v457 = vsel %vm446, %v415, %v445
      %v458 = vsel %vm448, %v415, %v445
      %v459 = vrot.slane %v458, 2
      %v460 = vsel %vm451, %v415, %v445
      %v461 = vrot.slane %v460, 4
      %v462 = vsel %vm454, %v445, %v415
      %v463 = vrot.slane %v462, 6
      %472 = vst [vmem:[#allocation2] sm:$0x3] %v447
      %473 = vst [vmem:[#allocation2 + $0x2] sm:$0x3] %v450
      %474 = vst [vmem:[#allocation2 + $0x4] sm:$0x3] %v453
      %475 = vst [vmem:[#allocation2 + $0x6] sm:$0x3] %v456
      %476 = vst [vmem:[#allocation2 + $0x8] sm:$0x3] %v457
      %477 = vst [vmem:[#allocation2 + $0xa] sm:$0x3] %v459
      %478 = vst [vmem:[#allocation2 + $0xc] sm:$0x3] %v461
      %479 = vst [vmem:[#allocation2 + $0xe] sm:$0x3] %v463
      %480 = vst [vmem:[#allocation1] ss:$4 sm:$0xff] %v447
      %v481 = vld.sshfl [vmem:[#allocation1 + $0x8] sm:$0xff pattern:$0x73625140]
      %s482 = scalar_lea.vmem [#allocation1], 32
      %483 = vst [vmem:[%s482] ss:$4 sm:$0xff] %v450
      %v484 = vld.sshfl [vmem:[#allocation1 + $0x28] sm:$0xff pattern:$0x73625140]
      %485 = vst [vmem:[#allocation1] ss:$4 sm:$0xff] %v453
      %v486 = vld.sshfl [vmem:[#allocation1 + $0x8] sm:$0xff pattern:$0x73625140]
      %487 = vst [vmem:[%s482] ss:$4 sm:$0xff] %v456
      %v488 = vld.sshfl [vmem:[#allocation1 + $0x28] sm:$0xff pattern:$0x73625140]
      %489 = vst [vmem:[#allocation1] ss:$4 sm:$0xff] %v457
      %v490 = vld.sshfl [vmem:[#allocation1 + $0x8] sm:$0xff pattern:$0x73625140]
      %491 = vst [vmem:[%s482] ss:$4 sm:$0xff] %v459
      %v492 = vld.sshfl [vmem:[#allocation1 + $0x28] sm:$0xff pattern:$0x73625140]
      %493 = vst [vmem:[#allocation1] ss:$4 sm:$0xff] %v461
      %v494 = vld.sshfl [vmem:[#allocation1 + $0x8] sm:$0xff pattern:$0x73625140]
      %495 = vst [vmem:[%s482] ss:$4 sm:$0xff] %v463
      %v496 = vld.sshfl [vmem:[#allocation1 + $0x28] sm:$0xff pattern:$0x73625140]
      %505 = vst [vmem:[#allocation3] sm:$0x3] %v481
      %506 = vst [vmem:[#allocation3 + $0x2] sm:$0x3] %v484
      %507 = vst [vmem:[#allocation3 + $0x4] sm:$0x3] %v486
      %508 = vst [vmem:[#allocation3 + $0x6] sm:$0x3] %v488
      %509 = vst [vmem:[#allocation3 + $0x8] sm:$0x3] %v490
      %510 = vst [vmem:[#allocation3 + $0xa] sm:$0x3] %v492
      %511 = vst [vmem:[#allocation3 + $0xc] sm:$0x3] %v494
      %512 = vst [vmem:[#allocation3 + $0xe] sm:$0x3] %v496
      loop: start=0, step=1, limit=8
      $region41: #{context_response_encoding.3} parent=39 // loop_pre_header
        _
      $region42: #{context_response_encoding.3} parent=39 // loop_header
        %s514 = sphi 0, %s518
        %p515 = scmp.ge.s32.totalorder %s514, 8
        %v519 = vphi 0.0, %v626
        %v520 = vphi 0.0, %v620
        %v521 = vphi 0.0, %v663
        %v522 = vphi 0.0, %v657
      $region43: #{context_response_encoding.3} parent=39 // loop_header_branch
        %517 = sbr.rel (%p515) target = $region47
      $region44: #{context_response_encoding.3} parent=39 // loop_body
        %s523 = ssub.s32 7, %s514
        %s524 = smul.u32 %s514, 2
        %s525 = scalar_lea.vmem [#allocation2], %s524
        %v526 = vld [vmem:[%s525] sm:$0x3]
        %v527 = vld [vmem:[%s322] sm:$0xff]
        %v528 = vld [vmem:[%s322 + $0x8] sm:$0xff]
        %v529 = vld [vmem:[%s322 + $0x10] sm:$0xff]
        %v530 = vld [vmem:[%s322 + $0x18] sm:$0xff]
        %532 = vrot.lane.b32.xlu0 %v519, 32
        %v533 = vpop.permute.xlu0 %532
        %v534 = vsel %vm389, %v533, 0
        %536 = vmatpush.msra.mxu0 0.0
        %537 = vmatpush.msra.mxu0 0.0
        %538 = vmatpush.msra.mxu0 0.0
        %539 = vmatpush.msra.mxu0 0.0
        %540 = vmatpush.msra.mxu0 0.0
        %541 = vmatpush.msra.mxu0 0.0
        %542 = vmatpush.msra.mxu0 0.0
        %543 = vmatpush.msra.mxu0 0.0
        %544 = vmatpush.msra.mxu0 0.0
        %545 = vmatpush.msra.mxu0 0.0
        %546 = vmatpush.msra.mxu0 0.0
        %547 = vmatpush.msra.mxu0 0.0
        %548 = vmatpush.msra.mxu0 %v530
        %549 = vmatpush.msra.mxu0 %v529
        %550 = vmatpush.msra.mxu0 %v528
        %551 = vmatpush.msra.mxu0 %v527
        %552 = vmatmul.f32.gmra.mxu0 %v534
        %v553 = vpop.f32.mrf.mxu0
        %v554 = vadd.f32 0.0, %v553
        %555 = vdwg.mxu0
        %v556 = vadd.f32 %v526, %v554
        %s557 = smul.u32 %s523, 2
        %s558 = scalar_lea.vmem [#allocation3], %s557
        %v559 = vld [vmem:[%s558] sm:$0x3]
        %v560 = vld [vmem:[%s327] sm:$0xff]
        %v561 = vld [vmem:[%s327 + $0x8] sm:$0xff]
        %v562 = vld [vmem:[%s327 + $0x10] sm:$0xff]
        %v563 = vld [vmem:[%s327 + $0x18] sm:$0xff]
        %565 = vrot.lane.b32.xlu0 %v521, 32
        %v566 = vpop.permute.xlu0 %565
        %v567 = vsel %vm389, %v566, 0
        %569 = vmatpush.msra.mxu0 0.0
        %570 = vmatpush.msra.mxu0 0.0
        %571 = vmatpush.msra.mxu0 0.0
        %572 = vmatpush.msra.mxu0 0.0
        %573 = vmatpush.msra.mxu0 0.0
        %574 = vmatpush.msra.mxu0 0.0
        %575 = vmatpush.msra.mxu0 0.0
        %576 = vmatpush.msra.mxu0 0.0
        %577 = vmatpush.msra.mxu0 0.0
        %578 = vmatpush.msra.mxu0 0.0
        %579 = vmatpush.msra.mxu0 0.0
        %580 = vmatpush.msra.mxu0 0.0
        %581 = vmatpush.msra.mxu0 %v563
        %582 = vmatpush.msra.mxu0 %v562
        %583 = vmatpush.msra.mxu0 %v561
        %584 = vmatpush.msra.mxu0 %v560
        %585 = vmatmul.f32.gmra.mxu0 %v567
        %v586 = vpop.f32.mrf.mxu0
        %v587 = vadd.f32 0.0, %v586
        %588 = vdwg.mxu0
        %v589 = vadd.f32 %v559, %v587
        %v590 = vxor.u32 %v556, 2147483648
        %v591 = vmul.f32 %v590, 1.442695
        %v592 = vpow.pop %v591
        %v593 = vadd.f32 %v592, 1.0
        %v594 = vrcp.pop %v593
        %v595 = vmul.f32 %v593, %v594
        %v596 = vsub.f32 1.0, %v595
        %v597 = vmul.f32 %v594, %v596
        %v598 = vadd.f32 %v594, %v597
        %vm599 = vweird.f32 %v593
        %vm600 = vweird.f32 %v594
        %vm601 = vmor %vm599, %vm600
        %v602 = vsel %vm601, %v594, %v598
        %v603 = vand.u32 2147483647, %v593
        %vm604 = vcmp.eq.f32.partialorder %v603, 8.507059e+37
        %v605 = vand.u32 %v593, 2147483648
        %v606 = vor.u32 1.1754944e-38, %v605
        %v607 = vsel %vm604, %v606, %v602
        %v608 = vmul.f32 1.0, %v607
        %v609 = vtanh.pop %v556
        %v610 = vmul.f32 %v608, %v520
        %612 = vrot.lane.b32.xlu0 %v609, 64
        %v613 = vpop.permute.xlu0 %612
        %v615 = vmul.f32 %v608, %v613
        %617 = vrot.lane.b32.xlu0 %v615, 32
        %v618 = vpop.permute.xlu0 %617
        %v620 = vadd.f32 %v610, %v618
        %v621 = vtanh.pop %v620
        %623 = vrot.lane.b32.xlu0 %v621, 64
        %v624 = vpop.permute.xlu0 %623
        %v626 = vmul.f32 %v608, %v624
        %v627 = vxor.u32 %v589, 2147483648
        %v628 = vmul.f32 %v627, 1.442695
        %v629 = vpow.pop %v628
        %v630 = vadd.f32 %v629, 1.0
        %v631 = vrcp.pop %v630
        %v632 = vmul.f32 %v630, %v631
        %v633 = vsub.f32 1.0, %v632
        %v634 = vmul.f32 %v631, %v633
        %v635 = vadd.f32 %v631, %v634
        %vm636 = vweird.f32 %v630
        %vm637 = vweird.f32 %v631
        %vm638 = vmor %vm636, %vm637
        %v639 = vsel %vm638, %v631, %v635
        %v640 = vand.u32 2147483647, %v630
        %vm641 = vcmp.eq.f32.partialorder %v640, 8.507059e+37
        %v642 = vand.u32 %v630, 2147483648
        %v643 = vor.u32 1.1754944e-38, %v642
        %v644 = vsel %vm641, %v643, %v639
        %v645 = vmul.f32 1.0, %v644
        %v646 = vtanh.pop %v589
        %v647 = vmul.f32 %v645, %v522
        %649 = vrot.lane.b32.xlu0 %v646, 64
        %v650 = vpop.permute.xlu0 %649
        %v652 = vmul.f32 %v645, %v650
        %654 = vrot.lane.b32.xlu0 %v652, 32
        %v655 = vpop.permute.xlu0 %654
        %v657 = vadd.f32 %v647, %v655
        %v658 = vtanh.pop %v657
        %660 = vrot.lane.b32.xlu0 %v658, 64
        %v661 = vpop.permute.xlu0 %660
        %v663 = vmul.f32 %v645, %v661
        %665 = vrot.lane.b32.xlu0 %v626, 32
        %v666 = vpop.permute.xlu0 %665
        %s668 = scalar_lea.vmem %s336, %s524
        %vm669 = vcmask 254976
        %670 = vst.msk [vmem:[%s668] sm:$0x3] %vm669, %v666
        %672 = vrot.lane.b32.xlu0 %v663, 32
        %v673 = vpop.permute.xlu0 %672
        %s675 = scalar_lea.vmem %s341, %s557
        %676 = vst.msk [vmem:[%s675] sm:$0x3] %vm669, %v673
      $region45: #{context_response_encoding.3} parent=39 // loop_footer
        %s518 = sadd.s32 1, %s514
      $region46: #{context_response_encoding.3} parent=39 // loop_footer_branch
        %513 = sbr.rel target = $region42
      $region47: #{context_response_encoding.3} parent=39 // loop_exit
        _
      %p677 = scmp.lt.s32.totalorder %s18, 1
      %s678 = scalar_select %p677, %s18, 1
      %s679 = smul.addr %s678, 8
      %s680 = smul.addr %s679, 2
      %s681 = scalar_lea.vmem %s5, %s680
      %p682 = scmp.lt.s32.totalorder %s18, 1
      %s683 = scalar_select %p682, %s18, 1
      %s684 = smul.addr %s683, 8
      %s685 = smul.addr %s684, 2
      %s686 = scalar_lea.vmem %s6, %s685
      // Predicated region
      $region48: #{context_response_encoding.3} parent=39 // pred_check
        %p687 = pneg %p166
      $region49: #{context_response_encoding.3} parent=39 // pred_check_branch
        %689 = sbr.rel (%p687) target = $region51
      $region50: #{context_response_encoding.3} parent=39 // pred_region
        _
      $region51: #{context_response_encoding.3} parent=39 // pred_fallthru
        _
      // Predicated region
      $region52: #{context_response_encoding.3} parent=39 // pred_check
        %p690 = pneg %p192
      $region53: #{context_response_encoding.3} parent=39 // pred_check_branch
        %692 = sbr.rel (%p690) target = $region55
      $region54: #{context_response_encoding.3} parent=39 // pred_region
        _
      $region55: #{context_response_encoding.3} parent=39 // pred_fallthru
        _
    $region40: #{context_response_encoding.3} parent=5 // pred_fallthru
      _
    %p693 = scmp.le.s32.totalorder 2, %s13
    // Predicated region
    $region56: #{context_response_encoding.3} parent=5 // pred_check
      %p694 = pneg %p693
    $region57: #{context_response_encoding.3} parent=5 // pred_check_branch
      %696 = sbr.rel (%p694) target = $region59
    $region58: #{context_response_encoding.3} parent=5 // pred_region
      %s697 = ssub.s32 %s13, 2
      // Predicated region
      $region60: #{context_response_encoding.3} parent=58 // pred_check
        %p698 = pneg %p172
      $region61: #{context_response_encoding.3} parent=58 // pred_check_branch
        %700 = sbr.rel (%p698) target = $region63
      $region62: #{context_response_encoding.3} parent=58 // pred_region
        %p701 = scmp.lt.s32.totalorder %s19, 1
        %s702 = scalar_select %p701, %s19, 1
        %s703 = smul.addr %s702, 8
        %s704 = smul.addr %s703, 2
        %s705 = scalar_lea.vmem %s5, %s704
      $region63: #{context_response_encoding.3} parent=58 // pred_fallthru
        _
      // Predicated region
      $region64: #{context_response_encoding.3} parent=58 // pred_check
        %p706 = pneg %p198
      $region65: #{context_response_encoding.3} parent=58 // pred_check_branch
        %708 = sbr.rel (%p706) target = $region67
      $region66: #{context_response_encoding.3} parent=58 // pred_region
        %p709 = scmp.lt.s32.totalorder %s19, 1
        %s710 = scalar_select %p709, %s19, 1
        %s711 = smul.addr %s710, 8
        %s712 = smul.addr %s711, 2
        %s713 = scalar_lea.vmem %s6, %s712
      $region67: #{context_response_encoding.3} parent=58 // pred_fallthru
        _
    $region59: #{context_response_encoding.3} parent=5 // pred_fallthru
      _
  $region6: #{context_response_encoding.3} parent=0 // loop_footer
    %s17 = sadd.s32 1, %s13
  $region7: #{context_response_encoding.3} parent=0 // loop_footer_branch
    %12 = sbr.rel target = $region3
  $region8: #{context_response_encoding.3} parent=0 // loop_exit
    _

</llo_original>
